<compile_context>
chip_gen: v6e
topology: v6e:2x2x1
jax: 0.10.0
libtpu: 0.0.40
codegen_flags: <defaults>
</compile_context>

<pallas_src>
import math

import jax
import jax.numpy as jnp
import numpy as np
from jax.experimental import pallas as pl
from jax.experimental.pallas import tpu as pltpu


def _round_up(x, m):
    return (x + m - 1) // m * m


def deconv_kernel(cols_ref, w_ref, b_ref, o_ref):
    """One fused MXU matmul per (batch, P-tile).

    cols_ref: (1, 4*C_in, TP)    sub-pixel im2col columns, flattened grid P on lanes
    w_ref:    (4*C_out, 4*C_in)  fused sub-pixel weight
    b_ref:    (4*C_out, 1)       bias (broadcast over lanes)
    o_ref:    (1, 4*C_out, TP)   lane-dense output tile
    """
    acc = jnp.dot(w_ref[...], cols_ref[0], preferred_element_type=jnp.float32)
    o_ref[...] = (acc + b_ref[...])[None].astype(o_ref.dtype)


def transition_block_forward(x_nchw, weight, bias, *, tp_max=1024):
    """ConvTranspose2d(stride=2, kernel=3, padding=0) forward.

    x_nchw: (N, C_in, H, W)       float32
    weight: (C_in, C_out, 3, 3)   float32 (PyTorch ConvTranspose2d layout)
    bias:   (C_out,)              float32
    returns (N, C_out, 2H+1, 2W+1)
    """
    N, C_in, H, W = x_nchw.shape
    C_out = weight.shape[1]
    assert weight.shape[2] == 3 and weight.shape[3] == 3
    H_out, W_out = 2 * H + 1, 2 * W + 1
    Hs, Ws = H + 1, W + 1          # sub-pixel (per-phase) grid
    P = Hs * Ws

    # --- glue: 4-tap im2col of the 1-padded raw input (no dilation zeros) ----------
    xpad = jnp.pad(x_nchw, ((0, 0), (0, 0), (1, 1), (1, 1)))      # (N, C_in, H+2, W+2)
    taps = []
    for dp in (0, 1):
        for dq in (0, 1):
            taps.append(
                xpad[:, :, 1 - dp:1 - dp + Hs, 1 - dq:1 - dq + Ws].reshape(N, C_in, P)
            )
    cols = jnp.concatenate(taps, axis=1)          # (N, 4*C_in, P), rows = (dp, dq, ci)

    # Lane padding / P-tiling (P on the lane dim -> tile must be a multiple of 128).
    tp = min(_round_up(P, 128), _round_up(tp_max, 128))
    num_tiles = pl.cdiv(_round_up(P, 128), tp)
    P_pad = num_tiles * tp
    cols = jnp.pad(cols, ((0, 0), (0, 0), (0, P_pad - P)))

    # --- fused sub-pixel weight: W_f[(p,q,co),(dp,dq,ci)] = w[ci,co,p+2dp,q+2dq] ----
    w_ext = jnp.pad(weight, ((0, 0), (0, 0), (0, 1), (0, 1)))     # (C_in, C_out, 4, 4)
    w6 = w_ext.reshape(C_in, C_out, 2, 2, 2, 2)                   # (ci, co, dp, p, dq, q)
    w_f = jnp.transpose(w6, (3, 5, 1, 2, 4, 0)).reshape(4 * C_out, 4 * C_in)
    b_f = jnp.tile(bias, 4).reshape(4 * C_out, 1)                 # rows = (p, q, co)

    out_sub = pl.pallas_call(
        deconv_kernel,
        out_shape=jax.ShapeDtypeStruct((N, 4 * C_out, P_pad), x_nchw.dtype),
        grid_spec=pltpu.PrefetchScalarGridSpec(
            num_scalar_prefetch=0,
            grid=(N, num_tiles),
            in_specs=[
                pl.BlockSpec((1, 4 * C_in, tp), lambda n, t: (n, 0, t)),
                pl.BlockSpec((4 * C_out, 4 * C_in), lambda n, t: (0, 0)),
                pl.BlockSpec((4 * C_out, 1), lambda n, t: (0, 0)),
            ],
            out_specs=pl.BlockSpec((1, 4 * C_out, tp), lambda n, t: (n, 0, t)),
        ),
        compiler_params=pltpu.CompilerParams(
            dimension_semantics=("parallel", "parallel"),
        ),
    )(cols, w_f, b_f)

    # --- glue: pixel shuffle (depth -> space) + crop to (2H+1, 2W+1) ----------------
    out_sub = out_sub[:, :, :P].reshape(N, 2, 2, C_out, Hs, Ws)   # (n, p, q, co, a, b)
    out = jnp.transpose(out_sub, (0, 3, 4, 1, 5, 2)).reshape(N, C_out, 2 * Hs, 2 * Ws)
    return out[:, :, :H_out, :W_out]


def reference_conv_transpose(x_nchw, weight, bias):
    """Naive numpy reference of ConvTranspose2d(stride=2, k=3, pad=0)."""
    x = np.asarray(x_nchw)
    w = np.asarray(weight)
    b = np.asarray(bias)
    N, C_in, H, W = x.shape
    C_out = w.shape[1]
    H_out, W_out = 2 * H + 1, 2 * W + 1
    out = np.zeros((N, C_out, H_out, W_out), np.float32)
    for i in range(H):
        for j in range(W):
            contrib = np.einsum("nc,cokl->nokl", x[:, :, i, j], w)
            out[:, :, 2 * i:2 * i + 3, 2 * j:2 * j + 3] += contrib
    out += b[None, :, None, None]
    return out


if __name__ == "__main__":
    # Shapes consistent with the module: in_channels=4, up_scale=2 -> C_out=16
    N, C_in, H, W = 2, 4, 16, 16
    up_scale = 2
    C_out = C_in * up_scale ** 2

    key = jax.random.PRNGKey(0)
    kx, kw, kb = jax.random.split(key, 3)

    bound = 1.0 / math.sqrt(C_in * 3 * 3)
    weight = jax.random.uniform(kw, (C_in, C_out, 3, 3), jnp.float32, -bound, bound)
    bias = jax.random.uniform(kb, (C_out,), jnp.float32, -bound, bound)
    x = jax.random.normal(kx, (N, C_in, H, W), jnp.float32)

    y = jax.jit(transition_block_forward)(x, weight, bias)
    y = jax.block_until_ready(y)

    y_ref = reference_conv_transpose(x, weight, bias)
    assert y.shape == y_ref.shape, (y.shape, y_ref.shape)
    np.testing.assert_allclose(np.asarray(y), y_ref, rtol=1e-4, atol=1e-4)

    print("KERNEL_OK")
</pallas_src>

<mosaic_0001>
module attributes {stable_mosaic.version = 11 : i64} {
  func.func @deconv_kernel(%arg0: i32, %arg1: i32, %arg2: memref<1x16x384xf32, #tpu.memory_space<vmem>>, %arg3: memref<64x16xf32, #tpu.memory_space<vmem>>, %arg4: memref<64x1xf32, #tpu.memory_space<vmem>>, %arg5: memref<1x64x384xf32, #tpu.memory_space<vmem>>) attributes {dimension_semantics = [#tpu.dimension_semantics<parallel>, #tpu.dimension_semantics<parallel>], iteration_bounds = array<i64: 2, 1>, scalar_prefetch = 0 : i64, scratch_operands = 0 : i64, tpu.core_type = #tpu.core_type<tc>, window_params = [{transform_indices = @transform_0, window_bounds = array<i64: 1, 16, 384>}, {pipeline_mode = #tpu.pipeline_mode<synchronous>, transform_indices = @transform_1, window_bounds = array<i64: 64, 16>}, {pipeline_mode = #tpu.pipeline_mode<synchronous>, transform_indices = @transform_2, window_bounds = array<i64: 64, 1>}, {transform_indices = @transform_3, window_bounds = array<i64: 1, 64, 384>}]} {
    %c0 = arith.constant 0 : index
    %c0_0 = arith.constant 0 : index
    %0 = vector.load %arg3[%c0, %c0_0] : memref<64x16xf32, #tpu.memory_space<vmem>>, vector<64x16xf32>
    %c0_1 = arith.constant 0 : index
    %c0_2 = arith.constant 0 : index
    %c0_3 = arith.constant 0 : index
    %1 = vector.load %arg2[%c0_1, %c0_2, %c0_3] : memref<1x16x384xf32, #tpu.memory_space<vmem>>, vector<1x16x384xf32>
    %2 = vector.shape_cast %1 : vector<1x16x384xf32> to vector<16x384xf32>
    %cst = arith.constant dense<0.000000e+00> : vector<64x384xf32>
    %3 = tpu.matmul %0, %2, %cst {dimension_numbers = #tpu.dot_dimension_numbers<[1], [0], [0], [1], [0, 0, 1, 1], [], []>} : vector<64x16xf32>, vector<16x384xf32>, vector<64x384xf32> -> vector<64x384xf32>
    %c0_4 = arith.constant 0 : index
    %c0_5 = arith.constant 0 : index
    %4 = vector.load %arg4[%c0_4, %c0_5] : memref<64x1xf32, #tpu.memory_space<vmem>>, vector<64x1xf32>
    %5 = vector.broadcast %4 : vector<64x1xf32> to vector<64x384xf32>
    %6 = arith.addf %3, %5 : vector<64x384xf32>
    %7 = vector.shape_cast %6 : vector<64x384xf32> to vector<1x64x384xf32>
    %c0_6 = arith.constant 0 : index
    %c0_7 = arith.constant 0 : index
    %c0_8 = arith.constant 0 : index
    %8 = vector.load %arg5[%c0_6, %c0_7, %c0_8] : memref<1x64x384xf32, #tpu.memory_space<vmem>>, vector<1x64x384xf32>
    tpu.vector_store %arg5[%c0_6, %c0_7, %c0_8], %7 {strides = array<i32>} : memref<1x64x384xf32, #tpu.memory_space<vmem>>, vector<1x64x384xf32>,
    return
  }
  func.func @transform_0(%arg0: i32, %arg1: i32) -> (i32, i32, i32) {
    %c0_i32 = arith.constant 0 : i32
    %c0_i32_0 = arith.constant 0 : i32
    return %arg0, %c0_i32, %arg1 : i32, i32, i32
  }
  func.func @transform_1(%arg0: i32, %arg1: i32) -> (i32, i32) {
    %c0_i32 = arith.constant 0 : i32
    %c0_i32_0 = arith.constant 0 : i32
    %c0_i32_1 = arith.constant 0 : i32
    return %c0_i32, %c0_i32_0 : i32, i32
  }
  func.func @transform_2(%arg0: i32, %arg1: i32) -> (i32, i32) {
    %c0_i32 = arith.constant 0 : i32
    %c0_i32_0 = arith.constant 0 : i32
    %c0_i32_1 = arith.constant 0 : i32
    return %c0_i32, %c0_i32_0 : i32, i32
  }
  func.func @transform_3(%arg0: i32, %arg1: i32) -> (i32, i32, i32) {
    %c0_i32 = arith.constant 0 : i32
    %c0_i32_0 = arith.constant 0 : i32
    return %arg0, %c0_i32, %arg1 : i32, i32, i32
  }
}

</mosaic_0001>

<llo_original>
// kernel: tile.8
$region0: #{tile.8}
  #allocation2 [shape = 's32[1]{0}', space=sflag, size = 0x4, scoped, tag = 'scoped memory for tile.8']
  %s0 = inlined_call_operand.hbm [shape: f32[16], index: 0, kind: input, shape index: {}]
  %s1 = inlined_call_operand.vmem [shape: f32[4,16], index: 1, kind: output, shape index: {}]
  $region1: #{tile.8} parent=0
    #allocation0 [shape = 'u8[512]{0}', space=vmem, size = 0x400, scoped, tag = 'operand span for operand 0']
    #allocation1 [shape = 's32[1]{0}', space=sflag, size = 0x4, scoped, tag = 'scoped memory for tile.8']
    %2 = vsyncpa [#allocation1], 0
    // Predicated region
    $region2: #{tile.8} parent=1 // pred_check
      _
    $region3: #{tile.8} parent=1 // pred_check_branch
      %4 = sbr.rel (0) target = $region5
    $region4: #{tile.8} parent=1 // pred_region
      %s6 = ssub.s32 16, 16
      %7 = vsyncadd [#allocation1], %s6
      %s9 = sshll.u32 [#allocation0], 4
      %s10 = int_to_ptr.vmem [resolvable:$true] %s9
      %12 = dma.hbm_to_vmem [thread:$0]  %s0, 16, %s10, [#allocation1]
    $region5: #{tile.8} parent=1 // pred_fallthru
      _
    // Predicated region
    $region6: #{tile.8} parent=1 // pred_check
      _
    $region7: #{tile.8} parent=1 // pred_check_branch
      %14 = sbr.rel (0) target = $region9
    $region8: #{tile.8} parent=1 // pred_region
      %15 = dma.done [#allocation1], 16
    $region9: #{tile.8} parent=1 // pred_fallthru
      _
    %v16 = vld [vmem:[#allocation0] ss:$0 sm:$0xff]
    %17 = vst [vmem:[%s1] sm:$0xf] %v16
    %18 = vsyncpa [#allocation1], 1

// kernel: tile.0
$region0: #{tile.0}
  %s0 = inlined_call_operand.vmem [shape: f32[4,16], index: 0, kind: input, shape index: {}]
  %s1 = inlined_call_operand.vmem [shape: f32[64,1], index: 1, kind: output, shape index: {}]
  $region1: #{tile.0} parent=0
    #allocation0 [shape = 'u8[4096]{0}', space=vmem, size = 0x1000, scoped, tag = 'scoped mem for input reshape']
    %s3 = sshll.u32 1, 4
    %s4 = ssub.s32 %s3, 1
    %v5 = vld [vmem:[%s0] sm:%s4]
    %6 = vst [vmem:[#allocation0] sm:%s4] %v5
    %v7 = vld [vmem:[#allocation0] sm:$0xf]
    %vm8 = vcmask 7168
    %9 = vst.msk [vmem:[%s1] ss:$16 sm:$0x3] %vm8, %v7
    %10 = vst.msk [vmem:[%s1] ss:$16 sm:$0xc] %vm8, %v7
    %v11 = vld [vmem:[#allocation0] sm:$0xf]
    %12 = vrot.lane.b32.xlu0 %v11, 127
    %v13 = vpop.permute.xlu0 %12
    %vm14 = vcmask 7168
    %s15 = scalar_lea.vmem %s1, 1
    %16 = vst.msk [vmem:[%s15] ss:$16 sm:$0x3] %vm14, %v13
    %s17 = scalar_lea.vmem %s1, 1
    %18 = vst.msk [vmem:[%s17] ss:$16 sm:$0xc] %vm14, %v13
    %v19 = vld [vmem:[#allocation0] sm:$0xf]
    %20 = vrot.lane.b32.xlu0 %v19, 126
    %v21 = vpop.permute.xlu0 %20
    %vm22 = vcmask 7168
    %s23 = scalar_lea.vmem %s1, 2
    %24 = vst.msk [vmem:[%s23] ss:$16 sm:$0x3] %vm22, %v21
    %s25 = scalar_lea.vmem %s1, 2
    %26 = vst.msk [vmem:[%s25] ss:$16 sm:$0xc] %vm22, %v21
    %v27 = vld [vmem:[#allocation0] sm:$0xf]
    %28 = vrot.lane.b32.xlu0 %v27, 125
    %v29 = vpop.permute.xlu0 %28
    %vm30 = vcmask 7168
    %s31 = scalar_lea.vmem %s1, 3
    %32 = vst.msk [vmem:[%s31] ss:$16 sm:$0x3] %vm30, %v29
    %s33 = scalar_lea.vmem %s1, 3
    %34 = vst.msk [vmem:[%s33] ss:$16 sm:$0xc] %vm30, %v29
    %v35 = vld [vmem:[#allocation0] sm:$0xf]
    %36 = vrot.lane.b32.xlu0 %v35, 124
    %v37 = vpop.permute.xlu0 %36
    %vm38 = vcmask 7168
    %s39 = scalar_lea.vmem %s1, 4
    %40 = vst.msk [vmem:[%s39] ss:$16 sm:$0x3] %vm38, %v37
    %s41 = scalar_lea.vmem %s1, 4
    %42 = vst.msk [vmem:[%s41] ss:$16 sm:$0xc] %vm38, %v37
    %v43 = vld [vmem:[#allocation0] sm:$0xf]
    %44 = vrot.lane.b32.xlu0 %v43, 123
    %v45 = vpop.permute.xlu0 %44
    %vm46 = vcmask 7168
    %s47 = scalar_lea.vmem %s1, 5
    %48 = vst.msk [vmem:[%s47] ss:$16 sm:$0x3] %vm46, %v45
    %s49 = scalar_lea.vmem %s1, 5
    %50 = vst.msk [vmem:[%s49] ss:$16 sm:$0xc] %vm46, %v45
    %v51 = vld [vmem:[#allocation0] sm:$0xf]
    %52 = vrot.lane.b32.xlu0 %v51, 122
    %v53 = vpop.permute.xlu0 %52
    %vm54 = vcmask 7168
    %s55 = scalar_lea.vmem %s1, 6
    %56 = vst.msk [vmem:[%s55] ss:$16 sm:$0x3] %vm54, %v53
    %s57 = scalar_lea.vmem %s1, 6
    %58 = vst.msk [vmem:[%s57] ss:$16 sm:$0xc] %vm54, %v53
    %v59 = vld [vmem:[#allocation0] sm:$0xf]
    %60 = vrot.lane.b32.xlu0 %v59, 121
    %v61 = vpop.permute.xlu0 %60
    %vm62 = vcmask 7168
    %s63 = scalar_lea.vmem %s1, 7
    %64 = vst.msk [vmem:[%s63] ss:$16 sm:$0x3] %vm62, %v61
    %s65 = scalar_lea.vmem %s1, 7
    %66 = vst.msk [vmem:[%s65] ss:$16 sm:$0xc] %vm62, %v61
    %v67 = vld [vmem:[#allocation0] sm:$0xf]
    %68 = vrot.lane.b32.xlu0 %v67, 120
    %v69 = vpop.permute.xlu0 %68
    %vm70 = vcmask 7168
    %s71 = scalar_lea.vmem %s1, 8
    %72 = vst.msk [vmem:[%s71] ss:$16 sm:$0x3] %vm70, %v69
    %s73 = scalar_lea.vmem %s1, 8
    %74 = vst.msk [vmem:[%s73] ss:$16 sm:$0xc] %vm70, %v69
    %v75 = vld [vmem:[#allocation0] sm:$0xf]
    %76 = vrot.lane.b32.xlu0 %v75, 119
    %v77 = vpop.permute.xlu0 %76
    %vm78 = vcmask 7168
    %s79 = scalar_lea.vmem %s1, 9
    %80 = vst.msk [vmem:[%s79] ss:$16 sm:$0x3] %vm78, %v77
    %s81 = scalar_lea.vmem %s1, 9
    %82 = vst.msk [vmem:[%s81] ss:$16 sm:$0xc] %vm78, %v77
    %v83 = vld [vmem:[#allocation0] sm:$0xf]
    %84 = vrot.lane.b32.xlu0 %v83, 118
    %v85 = vpop.permute.xlu0 %84
    %vm86 = vcmask 7168
    %s87 = scalar_lea.vmem %s1, 10
    %88 = vst.msk [vmem:[%s87] ss:$16 sm:$0x3] %vm86, %v85
    %s89 = scalar_lea.vmem %s1, 10
    %90 = vst.msk [vmem:[%s89] ss:$16 sm:$0xc] %vm86, %v85
    %v91 = vld [vmem:[#allocation0] sm:$0xf]
    %92 = vrot.lane.b32.xlu0 %v91, 117
    %v93 = vpop.permute.xlu0 %92
    %vm94 = vcmask 7168
    %s95 = scalar_lea.vmem %s1, 11
    %96 = vst.msk [vmem:[%s95] ss:$16 sm:$0x3] %vm94, %v93
    %s97 = scalar_lea.vmem %s1, 11
    %98 = vst.msk [vmem:[%s97] ss:$16 sm:$0xc] %vm94, %v93
    %v99 = vld [vmem:[#allocation0] sm:$0xf]
    %100 = vrot.lane.b32.xlu0 %v99, 116
    %v101 = vpop.permute.xlu0 %100
    %vm102 = vcmask 7168
    %s103 = scalar_lea.vmem %s1, 12
    %104 = vst.msk [vmem:[%s103] ss:$16 sm:$0x3] %vm102, %v101
    %s105 = scalar_lea.vmem %s1, 12
    %106 = vst.msk [vmem:[%s105] ss:$16 sm:$0xc] %vm102, %v101
    %v107 = vld [vmem:[#allocation0] sm:$0xf]
    %108 = vrot.lane.b32.xlu0 %v107, 115
    %v109 = vpop.permute.xlu0 %108
    %vm110 = vcmask 7168
    %s111 = scalar_lea.vmem %s1, 13
    %112 = vst.msk [vmem:[%s111] ss:$16 sm:$0x3] %vm110, %v109
    %s113 = scalar_lea.vmem %s1, 13
    %114 = vst.msk [vmem:[%s113] ss:$16 sm:$0xc] %vm110, %v109
    %v115 = vld [vmem:[#allocation0] sm:$0xf]
    %116 = vrot.lane.b32.xlu0 %v115, 114
    %v117 = vpop.permute.xlu0 %116
    %vm118 = vcmask 7168
    %s119 = scalar_lea.vmem %s1, 14
    %120 = vst.msk [vmem:[%s119] ss:$16 sm:$0x3] %vm118, %v117
    %s121 = scalar_lea.vmem %s1, 14
    %122 = vst.msk [vmem:[%s121] ss:$16 sm:$0xc] %vm118, %v117
    %v123 = vld [vmem:[#allocation0] sm:$0xf]
    %124 = vrot.lane.b32.xlu0 %v123, 113
    %v125 = vpop.permute.xlu0 %124
    %vm126 = vcmask 7168
    %s127 = scalar_lea.vmem %s1, 15
    %128 = vst.msk [vmem:[%s127] ss:$16 sm:$0x3] %vm126, %v125
    %s129 = scalar_lea.vmem %s1, 15
    %130 = vst.msk [vmem:[%s129] ss:$16 sm:$0xc] %vm126, %v125

// kernel: transition_block_forward.1
$region0: #{transition_block_forward.1}
  #allocation0 [shape = 'u32[]', space=smem, size = 0x4, offset = 0x4, fixed_abs, tag = 'smem constant byte address 0x4 - core index']
  #allocation1 [shape = 'u32[144,128]{1,0:T(1,128)}', space=vmem, size = 0x12000, scoped, tag = 'internal scratch']
  %s0 = inlined_call_operand.vmem [shape: f32[2,16,384], index: 0, kind: input, shape index: {}]
  %s1 = inlined_call_operand.vmem [shape: f32[64,16], index: 1, kind: input, shape index: {}]
  %s2 = inlined_call_operand.vmem [shape: f32[64,1], index: 2, kind: input, shape index: {}]
  %s3 = inlined_call_operand.vmem [shape: f32[2,64,384], index: 3, kind: output, shape index: {}]
  %s4 = sld [smem:[#allocation0]]
  $region45: #{transition_block_forward.1} parent=0
    _
  %s6 = ssub.s32 1, %s4
  %s7 = scalar_select 0, %s6, %s4
  loop: start=0, step=1, limit=4
  $region2: #{transition_block_forward.1} parent=0 // loop_pre_header
    _
  $region3: #{transition_block_forward.1} parent=0 // loop_header
    %s9 = sphi 0, %s13
    %p10 = scmp.ge.s32.totalorder %s9, 4
    %s16 = sphi 0, %s28
    %s17 = sphi 0, %s24
    %s18 = sphi 0, %s16
    %s19 = sphi 0, %s17
    %s20 = sphi 0, %s18
    %s21 = sphi 0, %s19
    %s33 = sphi 0, %s35
    %s36 = sphi 0, %s33
    %s37 = sphi 0, %s36
    %s53 = sphi 0, %s37
    %s57 = sphi 0, %s57
    %s59 = sphi 0, %s57
    %s60 = sphi 0, %s59
    %s74 = sphi 0, %s60
    %s78 = sphi 0, %s78
    %s80 = sphi 0, %s78
    %s81 = sphi 0, %s80
    %s95 = sphi 0, %s81
    %s103 = sphi 0, %s105
    %s106 = sphi 0, %s103
    %s107 = sphi 0, %s106
    %s123 = sphi 0, %s107
  $region4: #{transition_block_forward.1} parent=0 // loop_header_branch
    %12 = sbr.rel (%p10) target = $region8
  $region5: #{transition_block_forward.1} parent=0 // loop_body
    %s14 = ssub.s32 %s9, 1
    %s15 = ssub.s32 %s9, 2
    %s22 = sadd.s32 1, %s17
    %p23 = scmp.ge.s32.totalorder %s22, 1
    %s24 = scalar_select %p23, 0, %s22
    %s25 = sadd.s32 1, %s16
    %s26 = scalar_select %p23, %s25, %s16
    %p27 = scmp.ge.s32.totalorder %s26, 2
    %s28 = scalar_select %p27, 0, %s26
    %s29 = ssub.s32 %s16, %s28
    %s30 = ssub.s32 %s17, %s24
    %s31 = sor.u32 %s29, %s30
    %p32 = scmp.eq.s32.totalorder %s31, 0
    %s34 = sadd.s32 %s33, 1
    %s35 = scalar_select %p32, %s33, %s34
    %p38 = pneg %p32
    %p39 = scmp.eq.s32.totalorder %s9, 1
    %p40 = por %p38, %p39
    %p41 = scmp.ne.s32.totalorder %s33, %s36
    %p42 = scmp.eq.s32.totalorder %s9, 0
    %p43 = por %p41, %p42
    %p44 = scmp.ne.s32.totalorder %s33, %s36
    %p45 = scmp.eq.s32.totalorder %s14, 1
    %p46 = por %p44, %p45
    %p47 = scmp.ne.s32.totalorder %s36, %s37
    %p48 = scmp.eq.s32.totalorder %s14, 0
    %p49 = por %p47, %p48
    %p50 = scmp.ne.s32.totalorder %s36, %s37
    %p51 = scmp.eq.s32.totalorder %s15, 1
    %p52 = por %p50, %p51
    %p54 = scmp.ne.s32.totalorder %s37, %s53
    %p55 = scmp.eq.s32.totalorder %s15, 0
    %p56 = por %p54, %p55
    %s58 = sadd.s32 %s57, 1
    %p61 = scmp.eq.s32.totalorder %s9, 1
    %p62 = scmp.ne.s32.totalorder %s57, %s59
    %p63 = scmp.eq.s32.totalorder %s9, 0
    %p64 = por %p62, %p63
    %p65 = scmp.ne.s32.totalorder %s57, %s59
    %p66 = scmp.eq.s32.totalorder %s14, 1
    %p67 = por %p65, %p66
    %p68 = scmp.ne.s32.totalorder %s59, %s60
    %p69 = scmp.eq.s32.totalorder %s14, 0
    %p70 = por %p68, %p69
    %p71 = scmp.ne.s32.totalorder %s59, %s60
    %p72 = scmp.eq.s32.totalorder %s15, 1
    %p73 = por %p71, %p72
    %p75 = scmp.ne.s32.totalorder %s60, %s74
    %p76 = scmp.eq.s32.totalorder %s15, 0
    %p77 = por %p75, %p76
    %s79 = sadd.s32 %s78, 1
    %p82 = scmp.eq.s32.totalorder %s9, 1
    %p83 = scmp.ne.s32.totalorder %s78, %s80
    %p84 = scmp.eq.s32.totalorder %s9, 0
    %p85 = por %p83, %p84
    %p86 = scmp.ne.s32.totalorder %s78, %s80
    %p87 = scmp.eq.s32.totalorder %s14, 1
    %p88 = por %p86, %p87
    %p89 = scmp.ne.s32.totalorder %s80, %s81
    %p90 = scmp.eq.s32.totalorder %s14, 0
    %p91 = por %p89, %p90
    %p92 = scmp.ne.s32.totalorder %s80, %s81
    %p93 = scmp.eq.s32.totalorder %s15, 1
    %p94 = por %p92, %p93
    %p96 = scmp.ne.s32.totalorder %s81, %s95
    %p97 = scmp.eq.s32.totalorder %s15, 0
    %p98 = por %p96, %p97
    %s99 = ssub.s32 %s16, %s28
    %s100 = ssub.s32 %s17, %s24
    %s101 = sor.u32 %s99, %s100
    %p102 = scmp.eq.s32.totalorder %s101, 0
    %s104 = sadd.s32 %s103, 1
    %s105 = scalar_select %p102, %s103, %s104
    %p108 = pneg %p102
    %p109 = scmp.eq.s32.totalorder %s9, 1
    %p110 = por %p108, %p109
    %p111 = scmp.ne.s32.totalorder %s103, %s106
    %p112 = scmp.eq.s32.totalorder %s9, 0
    %p113 = por %p111, %p112
    %p114 = scmp.ne.s32.totalorder %s103, %s106
    %p115 = scmp.eq.s32.totalorder %s14, 1
    %p116 = por %p114, %p115
    %p117 = scmp.ne.s32.totalorder %s106, %s107
    %p118 = scmp.eq.s32.totalorder %s14, 0
    %p119 = por %p117, %p118
    %p120 = scmp.ne.s32.totalorder %s106, %s107
    %p121 = scmp.eq.s32.totalorder %s15, 1
    %p122 = por %p120, %p121
    %p124 = scmp.ne.s32.totalorder %s107, %s123
    %p125 = scmp.eq.s32.totalorder %s15, 0
    %p126 = por %p124, %p125
    %p127 = scmp.le.s32.totalorder 1, %s9
    %p128 = scmp.lt.s32.totalorder %s9, 3
    %p129 = pnand %p127, %p128
    %p130 = pneg %p129
    // Predicated region
    $region9: #{transition_block_forward.1} parent=5 // pred_check
      _
    $region10: #{transition_block_forward.1} parent=5 // pred_check_branch
      %132 = sbr.rel (%p129) target = $region12
    $region11: #{transition_block_forward.1} parent=5 // pred_region
      %s133 = ssub.s32 %s9, 1
      // Predicated region
      $region13: #{transition_block_forward.1} parent=11 // pred_check
        %p134 = pneg %p70
      $region14: #{transition_block_forward.1} parent=11 // pred_check_branch
        %136 = sbr.rel (%p134) target = $region16
      $region15: #{transition_block_forward.1} parent=11 // pred_region
        _
      $region16: #{transition_block_forward.1} parent=11 // pred_fallthru
        _
      // Predicated region
      $region17: #{transition_block_forward.1} parent=11 // pred_check
        %p137 = pneg %p91
      $region18: #{transition_block_forward.1} parent=11 // pred_check_branch
        %139 = sbr.rel (%p137) target = $region20
      $region19: #{transition_block_forward.1} parent=11 // pred_region
        _
      $region20: #{transition_block_forward.1} parent=11 // pred_fallthru
        _
    $region12: #{transition_block_forward.1} parent=5 // pred_fallthru
      _
    %p140 = scmp.lt.s32.totalorder %s9, 2
    // Predicated region
    $region21: #{transition_block_forward.1} parent=5 // pred_check
      %p141 = pneg %p140
    $region22: #{transition_block_forward.1} parent=5 // pred_check_branch
      %143 = sbr.rel (%p141) target = $region24
    $region23: #{transition_block_forward.1} parent=5 // pred_region
      // Predicated region
      $region25: #{transition_block_forward.1} parent=23 // pred_check
        %p144 = pneg %p43
      $region26: #{transition_block_forward.1} parent=23 // pred_check_branch
        %146 = sbr.rel (%p144) target = $region28
      $region27: #{transition_block_forward.1} parent=23 // pred_region
        %s147 = smul.u32 3, %s17
        %p148 = scmp.lt.s32.totalorder %s16, 1
        %s149 = scalar_select %p148, %s16, 1
        %p150 = scmp.lt.s32.totalorder %s147, 2
        %s151 = scalar_select %p150, %s147, 2
        %s152 = smul.addr %s149, 6
        %s153 = sadd.s32 %s151, %s152
        %s154 = smul.addr %s153, 8
        %s155 = scalar_lea.vmem %s0, %s154
        %s156 = smul.u32 3, %s17
      $region28: #{transition_block_forward.1} parent=23 // pred_fallthru
        _
    $region24: #{transition_block_forward.1} parent=5 // pred_fallthru
      _
    %p157 = scmp.le.s32.totalorder 1, %s9
    %p158 = scmp.lt.s32.totalorder %s9, 3
    %p159 = pnand %p157, %p158
    %p160 = pneg %p159
    // Predicated region
    $region29: #{transition_block_forward.1} parent=5 // pred_check
      _
    $region30: #{transition_block_forward.1} parent=5 // pred_check_branch
      %162 = sbr.rel (%p159) target = $region32
    $region31: #{transition_block_forward.1} parent=5 // pred_region
      %s163 = ssub.s32 %s9, 1
      %s164 = smul.u32 3, %s19
      %p165 = scmp.lt.s32.totalorder %s18, 1
      %s166 = scalar_select %p165, %s18, 1
      %p167 = scmp.lt.s32.totalorder %s164, 2
      %s168 = scalar_select %p167, %s164, 2
      %s169 = smul.addr %s166, 6
      %s170 = sadd.s32 %s168, %s169
      %s171 = smul.addr %s170, 8
      %s172 = scalar_lea.vmem %s0, %s171
      %p173 = pneg %p49
      %p174 = pneg %p46
      %p175 = pneg %p70
      %p176 = pneg %p67
      %p177 = pneg %p91
      %p178 = pneg %p88
      %p179 = pneg %p119
      %p180 = pneg %p116
      %s181 = smul.u32 3, %s19
      %p182 = scmp.lt.s32.totalorder %s18, 1
      %s183 = scalar_select %p182, %s18, 1
      %p184 = scmp.lt.s32.totalorder %s181, 2
      %s185 = scalar_select %p184, %s181, 2
      %s186 = smul.addr %s183, 24
      %s187 = sadd.s32 %s185, %s186
      %s188 = smul.addr %s187, 8
      %s189 = scalar_lea.vmem %s3, %s188
      %s190 = smul.u32 3, %s19
      %p191 = scmp.lt.s32.totalorder %s18, 1
      %s192 = scalar_select %p191, %s18, 1
      %p193 = scmp.lt.s32.totalorder %s190, 2
      %s194 = scalar_select %p193, %s190, 2
      %s195 = smul.addr %s192, 6
      %s196 = sadd.s32 %s194, %s195
      %s197 = smul.addr %s196, 8
      %s198 = scalar_lea.vmem %s0, %s197
      %s199 = smul.u32 3, %s19
      %s200 = smul.u32 3, %s19
      %p201 = scmp.lt.s32.totalorder %s18, 1
      %s202 = scalar_select %p201, %s18, 1
      %p203 = scmp.lt.s32.totalorder %s200, 2
      %s204 = scalar_select %p203, %s200, 2
      %s205 = smul.addr %s202, 24
      %s206 = sadd.s32 %s204, %s205
      %s207 = smul.addr %s206, 8
      %s208 = scalar_lea.vmem %s3, %s207
      %s209 = smul.u32 3, %s19
      %v210 = vld [vmem:[%s1] sm:$0xff]
      %v211 = vld [vmem:[%s1 + $0x8] sm:$0xff]
      %v212 = vld [vmem:[%s1 + $0x10] sm:$0xff]
      %v213 = vld [vmem:[%s1 + $0x18] sm:$0xff]
      %v214 = vld [vmem:[%s1 + $0x20] sm:$0xff]
      %v215 = vld [vmem:[%s1 + $0x28] sm:$0xff]
      %v216 = vld [vmem:[%s1 + $0x30] sm:$0xff]
      %v217 = vld [vmem:[%s1 + $0x38] sm:$0xff]
      %v218 = vld [vmem:[%s198] sm:$0xff]
      %v219 = vld [vmem:[%s198 + $0x8] sm:$0xff]
      %v220 = vld [vmem:[%s198 + $0x10] sm:$0xff]
      %v221 = vld [vmem:[%s198 + $0x18] sm:$0xff]
      %v222 = vld [vmem:[%s198 + $0x20] sm:$0xff]
      %v223 = vld [vmem:[%s198 + $0x28] sm:$0xff]
      %v224 = vld [vmem:[%s2] sm:$0xff]
      %v225 = vld [vmem:[%s2 + $0x8] sm:$0xff]
      %v226 = vld [vmem:[%s2 + $0x10] sm:$0xff]
      %v227 = vld [vmem:[%s2 + $0x18] sm:$0xff]
      %v228 = vld [vmem:[%s2 + $0x20] sm:$0xff]
      %v229 = vld [vmem:[%s2 + $0x28] sm:$0xff]
      %v230 = vld [vmem:[%s2 + $0x30] sm:$0xff]
      %v231 = vld [vmem:[%s2 + $0x38] sm:$0xff]
      %233 = vset.pattern.permute.xlu0 0
      %234 = vperm.xlu0 %233, %v224
      %v235 = vpop.permute.xlu0 %234
      %238 = vset.pattern.permute.xlu0 0
      %239 = vperm.xlu0 %238, %v225
      %v240 = vpop.permute.xlu0 %239
      %243 = vset.pattern.permute.xlu0 0
      %244 = vperm.xlu0 %243, %v226
      %v245 = vpop.permute.xlu0 %244
      %248 = vset.pattern.permute.xlu0 0
      %249 = vperm.xlu0 %248, %v227
      %v250 = vpop.permute.xlu0 %249
      %253 = vset.pattern.permute.xlu0 0
      %254 = vperm.xlu0 %253, %v228
      %v255 = vpop.permute.xlu0 %254
      %258 = vset.pattern.permute.xlu0 0
      %259 = vperm.xlu0 %258, %v229
      %v260 = vpop.permute.xlu0 %259
      %263 = vset.pattern.permute.xlu0 0
      %264 = vperm.xlu0 %263, %v230
      %v265 = vpop.permute.xlu0 %264
      %268 = vset.pattern.permute.xlu0 0
      %269 = vperm.xlu0 %268, %v231
      %v270 = vpop.permute.xlu0 %269
      %vm272 = vcmask 130048
      %v274 = vsel %vm272, %v210, 0
      %v277 = vsel %vm272, %v211, 0
      %v280 = vsel %vm272, %v212, 0
      %v283 = vsel %vm272, %v213, 0
      %v286 = vsel %vm272, %v214, 0
      %v289 = vsel %vm272, %v215, 0
      %v292 = vsel %vm272, %v216, 0
      %v295 = vsel %vm272, %v217, 0
      %297 = vmatprep.subr.mxu0 0.0
      %298 = vmatpush1.msra.mxu0 0.0
      %299 = vmatprep.subr.mxu0 0.0
      %300 = vmatpush1.msra.mxu0 0.0
      %301 = vmatprep.subr.mxu0 0.0
      %302 = vmatpush1.msra.mxu0 0.0
      %303 = vmatprep.subr.mxu0 0.0
      %304 = vmatpush1.msra.mxu0 0.0
      %305 = vmatprep.subr.mxu0 0.0
      %306 = vmatpush1.msra.mxu0 0.0
      %307 = vmatprep.subr.mxu0 0.0
      %308 = vmatpush1.msra.mxu0 0.0
      %309 = vmatprep.subr.mxu0 0.0
      %310 = vmatpush1.msra.mxu0 0.0
      %311 = vmatprep.subr.mxu0 0.0
      %312 = vmatpush1.msra.mxu0 0.0
      %313 = vmatprep.subr.mxu0 0.0
      %314 = vmatpush1.msra.mxu0 0.0
      %315 = vmatprep.subr.mxu0 0.0
      %316 = vmatpush1.msra.mxu0 0.0
      %317 = vmatprep.subr.mxu0 0.0
      %318 = vmatpush1.msra.mxu0 0.0
      %319 = vmatprep.subr.mxu0 0.0
      %320 = vmatpush1.msra.mxu0 0.0
      %321 = vmatprep.subr.mxu0 0.0
      %322 = vmatpush1.msra.mxu0 0.0
      %323 = vmatprep.subr.mxu0 0.0
      %324 = vmatpush1.msra.mxu0 0.0
      %325 = vmatprep.subr.mxu0 %v222
      %326 = vmatpush1.msra.mxu0 %v221
      %327 = vmatprep.subr.mxu0 %v219
      %328 = vmatpush1.msra.mxu0 %v218
      %329 = vmatprep.subr.mxu0 0.0
      %330 = vmatpush2.msra.mxu0 0.0
      %331 = vmatprep.subr.mxu0 0.0
      %332 = vmatpush2.msra.mxu0 0.0
      %333 = vmatprep.subr.mxu0 0.0
      %334 = vmatpush2.msra.mxu0 0.0
      %335 = vmatprep.subr.mxu0 0.0
      %336 = vmatpush2.msra.mxu0 0.0
      %337 = vmatprep.subr.mxu0 0.0
      %338 = vmatpush2.msra.mxu0 0.0
      %339 = vmatprep.subr.mxu0 0.0
      %340 = vmatpush2.msra.mxu0 0.0
      %341 = vmatprep.subr.mxu0 0.0
      %342 = vmatpush2.msra.mxu0 0.0
      %343 = vmatprep.subr.mxu0 0.0
      %344 = vmatpush2.msra.mxu0 0.0
      %345 = vmatprep.subr.mxu0 0.0
      %346 = vmatpush2.msra.mxu0 0.0
      %347 = vmatprep.subr.mxu0 0.0
      %348 = vmatpush2.msra.mxu0 0.0
      %349 = vmatprep.subr.mxu0 0.0
      %350 = vmatpush2.msra.mxu0 0.0
      %351 = vmatprep.subr.mxu0 0.0
      %352 = vmatpush2.msra.mxu0 0.0
      %353 = vmatprep.subr.mxu0 0.0
      %354 = vmatpush2.msra.mxu0 0.0
      %355 = vmatprep.subr.mxu0 0.0
      %356 = vmatpush2.msra.mxu0 0.0
      %357 = vmatprep.subr.mxu0 0.0
      %358 = vmatpush2.msra.mxu0 0.0
      %359 = vmatprep.subr.mxu0 0.0
      %360 = vmatpush2.msra.mxu0 0.0
      %361 = vmatprep.mubr.f32.mxu0 0.0
      %362 = vmatmul.mubr.f32.gmra.mxu0 %v274
      %v363 = vpop.f32.mrf.mxu0
      %v364 = vadd.f32 %v235, %v363
      %v365 = vpop.f32.mrf.mxu0
      %v366 = vadd.f32 %v235, %v365
      %367 = vmatprep.mubr.f32.mxu0 0.0
      %368 = vmatmul.mubr.f32.gmra.mxu0 %v277
      %v369 = vpop.f32.mrf.mxu0
      %v370 = vadd.f32 %v240, %v369
      %v371 = vpop.f32.mrf.mxu0
      %v372 = vadd.f32 %v240, %v371
      %373 = vmatprep.mubr.f32.mxu0 0.0
      %374 = vmatmul.mubr.f32.gmra.mxu0 %v280
      %v375 = vpop.f32.mrf.mxu0
      %v376 = vadd.f32 %v245, %v375
      %v377 = vpop.f32.mrf.mxu0
      %v378 = vadd.f32 %v245, %v377
      %379 = vmatprep.mubr.f32.mxu0 0.0
      %380 = vmatmul.mubr.f32.gmra.mxu0 %v283
      %v381 = vpop.f32.mrf.mxu0
      %v382 = vadd.f32 %v250, %v381
      %v383 = vpop.f32.mrf.mxu0
      %v384 = vadd.f32 %v250, %v383
      %385 = vmatprep.mubr.f32.mxu0 0.0
      %386 = vmatmul.mubr.f32.gmra.mxu0 %v286
      %v387 = vpop.f32.mrf.mxu0
      %v388 = vadd.f32 %v255, %v387
      %v389 = vpop.f32.mrf.mxu0
      %v390 = vadd.f32 %v255, %v389
      %391 = vmatprep.mubr.f32.mxu0 0.0
      %392 = vmatmul.mubr.f32.gmra.mxu0 %v289
      %v393 = vpop.f32.mrf.mxu0
      %v394 = vadd.f32 %v260, %v393
      %v395 = vpop.f32.mrf.mxu0
      %v396 = vadd.f32 %v260, %v395
      %397 = vmatprep.mubr.f32.mxu0 0.0
      %398 = vmatmul.mubr.f32.gmra.mxu0 %v292
      %v399 = vpop.f32.mrf.mxu0
      %v400 = vadd.f32 %v265, %v399
      %v401 = vpop.f32.mrf.mxu0
      %v402 = vadd.f32 %v265, %v401
      %403 = vmatprep.mubr.f32.mxu0 0.0
      %404 = vmatmul.mubr.f32.gmra.mxu0 %v295
      %v405 = vpop.f32.mrf.mxu0
      %v406 = vadd.f32 %v270, %v405
      %v407 = vpop.f32.mrf.mxu0
      %v408 = vadd.f32 %v270, %v407
      %409 = vdwg.mxu0
      %410 = vmatprep.subr.mxu0 0.0
      %411 = vmatpush1.msra.mxu0 0.0
      %412 = vmatprep.subr.mxu0 0.0
      %413 = vmatpush1.msra.mxu0 0.0
      %414 = vmatprep.subr.mxu0 0.0
      %415 = vmatpush1.msra.mxu0 0.0
      %416 = vmatprep.subr.mxu0 0.0
      %417 = vmatpush1.msra.mxu0 0.0
      %418 = vmatprep.subr.mxu0 0.0
      %419 = vmatpush1.msra.mxu0 0.0
      %420 = vmatprep.subr.mxu0 0.0
      %421 = vmatpush1.msra.mxu0 0.0
      %422 = vmatprep.subr.mxu0 0.0
      %423 = vmatpush1.msra.mxu0 0.0
      %424 = vmatprep.subr.mxu0 0.0
      %425 = vmatpush1.msra.mxu0 0.0
      %426 = vmatprep.subr.mxu0 0.0
      %427 = vmatpush1.msra.mxu0 0.0
      %428 = vmatprep.subr.mxu0 0.0
      %429 = vmatpush1.msra.mxu0 0.0
      %430 = vmatprep.subr.mxu0 0.0
      %431 = vmatpush1.msra.mxu0 0.0
      %432 = vmatprep.subr.mxu0 0.0
      %433 = vmatpush1.msra.mxu0 0.0
      %434 = vmatprep.subr.mxu0 0.0
      %435 = vmatpush1.msra.mxu0 0.0
      %436 = vmatprep.subr.mxu0 0.0
      %437 = vmatpush1.msra.mxu0 0.0
      %438 = vmatprep.subr.mxu0 0.0
      %439 = vmatpush1.msra.mxu0 %v223
      %440 = vmatprep.subr.mxu0 0.0
      %441 = vmatpush1.msra.mxu0 %v220
      %442 = vmatprep.subr.mxu0 0.0
      %443 = vmatpush2.msra.mxu0 0.0
      %444 = vmatprep.subr.mxu0 0.0
      %445 = vmatpush2.msra.mxu0 0.0
      %446 = vmatprep.subr.mxu0 0.0
      %447 = vmatpush2.msra.mxu0 0.0
      %448 = vmatprep.subr.mxu0 0.0
      %449 = vmatpush2.msra.mxu0 0.0
      %450 = vmatprep.subr.mxu0 0.0
      %451 = vmatpush2.msra.mxu0 0.0
      %452 = vmatprep.subr.mxu0 0.0
      %453 = vmatpush2.msra.mxu0 0.0
      %454 = vmatprep.subr.mxu0 0.0
      %455 = vmatpush2.msra.mxu0 0.0
      %456 = vmatprep.subr.mxu0 0.0
      %457 = vmatpush2.msra.mxu0 0.0
      %458 = vmatprep.subr.mxu0 0.0
      %459 = vmatpush2.msra.mxu0 0.0
      %460 = vmatprep.subr.mxu0 0.0
      %461 = vmatpush2.msra.mxu0 0.0
      %462 = vmatprep.subr.mxu0 0.0
      %463 = vmatpush2.msra.mxu0 0.0
      %464 = vmatprep.subr.mxu0 0.0
      %465 = vmatpush2.msra.mxu0 0.0
      %466 = vmatprep.subr.mxu0 0.0
      %467 = vmatpush2.msra.mxu0 0.0
      %468 = vmatprep.subr.mxu0 0.0
      %469 = vmatpush2.msra.mxu0 0.0
      %470 = vmatprep.subr.mxu0 0.0
      %471 = vmatpush2.msra.mxu0 0.0
      %472 = vmatprep.subr.mxu0 0.0
      %473 = vmatpush2.msra.mxu0 0.0
      %474 = vmatprep.mubr.f32.mxu0 0.0
      %475 = vmatmul.mubr.f32.gmra.mxu0 %v274
      %v476 = vpop.f32.mrf.mxu0
      %v477 = vadd.f32 %v235, %v476
      %v478 = vpop.f32.mrf.mxu0
      %479 = vmatprep.mubr.f32.mxu0 0.0
      %480 = vmatmul.mubr.f32.gmra.mxu0 %v277
      %v481 = vpop.f32.mrf.mxu0
      %v482 = vadd.f32 %v240, %v481
      %v483 = vpop.f32.mrf.mxu0
      %484 = vmatprep.mubr.f32.mxu0 0.0
      %485 = vmatmul.mubr.f32.gmra.mxu0 %v280
      %v486 = vpop.f32.mrf.mxu0
      %v487 = vadd.f32 %v245, %v486
      %v488 = vpop.f32.mrf.mxu0
      %489 = vmatprep.mubr.f32.mxu0 0.0
      %490 = vmatmul.mubr.f32.gmra.mxu0 %v283
      %v491 = vpop.f32.mrf.mxu0
      %v492 = vadd.f32 %v250, %v491
      %v493 = vpop.f32.mrf.mxu0
      %494 = vmatprep.mubr.f32.mxu0 0.0
      %495 = vmatmul.mubr.f32.gmra.mxu0 %v286
      %v496 = vpop.f32.mrf.mxu0
      %v497 = vadd.f32 %v255, %v496
      %v498 = vpop.f32.mrf.mxu0
      %499 = vmatprep.mubr.f32.mxu0 0.0
      %500 = vmatmul.mubr.f32.gmra.mxu0 %v289
      %v501 = vpop.f32.mrf.mxu0
      %v502 = vadd.f32 %v260, %v501
      %v503 = vpop.f32.mrf.mxu0
      %504 = vmatprep.mubr.f32.mxu0 0.0
      %505 = vmatmul.mubr.f32.gmra.mxu0 %v292
      %v506 = vpop.f32.mrf.mxu0
      %v507 = vadd.f32 %v265, %v506
      %v508 = vpop.f32.mrf.mxu0
      %509 = vmatprep.mubr.f32.mxu0 0.0
      %510 = vmatmul.mubr.f32.gmra.mxu0 %v295
      %v511 = vpop.f32.mrf.mxu0
      %v512 = vadd.f32 %v270, %v511
      %v513 = vpop.f32.mrf.mxu0
      %514 = vdwg.mxu0
      %515 = vst [vmem:[%s208] sm:$0xff] %v364
      %516 = vst [vmem:[%s208 + $0x8] sm:$0xff] %v366
      %517 = vst [vmem:[%s208 + $0x10] sm:$0xff] %v477
      %518 = vst [vmem:[%s208 + $0x18] sm:$0xff] %v370
      %519 = vst [vmem:[%s208 + $0x20] sm:$0xff] %v372
      %520 = vst [vmem:[%s208 + $0x28] sm:$0xff] %v482
      %521 = vst [vmem:[%s208 + $0x30] sm:$0xff] %v376
      %522 = vst [vmem:[%s208 + $0x38] sm:$0xff] %v378
      %523 = vst [vmem:[%s208 + $0x40] sm:$0xff] %v487
      %524 = vst [vmem:[%s208 + $0x48] sm:$0xff] %v382
      %525 = vst [vmem:[%s208 + $0x50] sm:$0xff] %v384
      %526 = vst [vmem:[%s208 + $0x58] sm:$0xff] %v492
      %527 = vst [vmem:[%s208 + $0x60] sm:$0xff] %v388
      %528 = vst [vmem:[%s208 + $0x68] sm:$0xff] %v390
      %529 = vst [vmem:[%s208 + $0x70] sm:$0xff] %v497
      %530 = vst [vmem:[%s208 + $0x78] sm:$0xff] %v394
      %531 = vst [vmem:[%s208 + $0x80] sm:$0xff] %v396
      %532 = vst [vmem:[%s208 + $0x88] sm:$0xff] %v502
      %533 = vst [vmem:[%s208 + $0x90] sm:$0xff] %v400
      %534 = vst [vmem:[%s208 + $0x98] sm:$0xff] %v402
      %535 = vst [vmem:[%s208 + $0xa0] sm:$0xff] %v507
      %536 = vst [vmem:[%s208 + $0xa8] sm:$0xff] %v406
      %537 = vst [vmem:[%s208 + $0xb0] sm:$0xff] %v408
      %538 = vst [vmem:[%s208 + $0xb8] sm:$0xff] %v512
      %s539 = smul.u32 3, %s19
      %p540 = scmp.lt.s32.totalorder %s18, 1
      %s541 = scalar_select %p540, %s18, 1
      %p542 = scmp.lt.s32.totalorder %s539, 2
      %s543 = scalar_select %p542, %s539, 2
      %s544 = smul.addr %s541, 24
      %s545 = sadd.s32 %s543, %s544
      %s546 = smul.addr %s545, 8
      %s547 = scalar_lea.vmem %s3, %s546
      // Predicated region
      $region33: #{transition_block_forward.1} parent=31 // pred_check
        %p548 = pneg %p116
      $region34: #{transition_block_forward.1} parent=31 // pred_check_branch
        %550 = sbr.rel (%p548) target = $region36
      $region35: #{transition_block_forward.1} parent=31 // pred_region
        %s551 = smul.u32 3, %s19
      $region36: #{transition_block_forward.1} parent=31 // pred_fallthru
        _
    $region32: #{transition_block_forward.1} parent=5 // pred_fallthru
      _
    %p552 = scmp.le.s32.totalorder 2, %s9
    // Predicated region
    $region37: #{transition_block_forward.1} parent=5 // pred_check
      %p553 = pneg %p552
    $region38: #{transition_block_forward.1} parent=5 // pred_check_branch
      %555 = sbr.rel (%p553) target = $region40
    $region39: #{transition_block_forward.1} parent=5 // pred_region
      %s556 = ssub.s32 %s9, 2
      // Predicated region
      $region41: #{transition_block_forward.1} parent=39 // pred_check
        %p557 = pneg %p122
      $region42: #{transition_block_forward.1} parent=39 // pred_check_branch
        %559 = sbr.rel (%p557) target = $region44
      $region43: #{transition_block_forward.1} parent=39 // pred_region
        %s560 = smul.u32 3, %s21
        %p561 = scmp.lt.s32.totalorder %s20, 1
        %s562 = scalar_select %p561, %s20, 1
        %p563 = scmp.lt.s32.totalorder %s560, 2
        %s564 = scalar_select %p563, %s560, 2
        %s565 = smul.addr %s562, 24
        %s566 = sadd.s32 %s564, %s565
        %s567 = smul.addr %s566, 8
        %s568 = scalar_lea.vmem %s3, %s567
      $region44: #{transition_block_forward.1} parent=39 // pred_fallthru
        _
    $region40: #{transition_block_forward.1} parent=5 // pred_fallthru
      _
  $region6: #{transition_block_forward.1} parent=0 // loop_footer
    %s13 = sadd.s32 1, %s9
  $region7: #{transition_block_forward.1} parent=0 // loop_footer_branch
    %8 = sbr.rel target = $region3
  $region8: #{transition_block_forward.1} parent=0 // loop_exit
    _

</llo_original>
